<compile_context>
chip_gen: v5e
topology: v5e:2x2
jax: 0.10.0
libtpu: 0.0.40
codegen_flags: <defaults>
</compile_context>

<pallas_src>
import random

import jax
import jax.numpy as jnp
from jax.experimental import pallas as pl
from jax.experimental.pallas import tpu as pltpu

EPS = 1e-6


def _stats_kernel(x_ref, mu_ref, sig_ref):
    """Per-row mean / unbiased std over the last dim, single sweep."""
    L = x_ref.shape[-1]
    x = x_ref[...].astype(jnp.float32)
    s1 = jnp.sum(x, axis=-1, keepdims=True)
    s2 = jnp.sum(x * x, axis=-1, keepdims=True)
    mu = s1 * (1.0 / L)
    # torch.var default is unbiased -> /(L-1).  One-sweep form; clamp the tiny
    # negatives that cancellation can produce.
    var = jnp.maximum((s2 - s1 * mu) * (1.0 / max(L - 1, 1)), 0.0)
    mu_ref[...] = mu
    sig_ref[...] = jnp.sqrt(var + EPS)


def _apply_kernel(perm_ref, lmda_ref, x_ref, mu_ref, sig_ref,
                  mu2_ref, sig2_ref, o_ref):
    # perm_ref : SMEM (B,) int32 scalar prefetch (consumed by index_maps)
    # lmda_ref : SMEM (B,) f32   per-sample Beta(alpha, alpha) draw
    # x_ref    : VMEM (1, TC, L) tile of x[b]
    # mu/sig   : VMEM (1, TC, 1) stats of x[b]
    # mu2/sig2 : VMEM (1, TC, 1) stats of x[perm[b]] (perm-driven index_map)
    del perm_ref
    b = pl.program_id(0)
    lmda = lmda_ref[b]                         # f32 scalar read from SMEM

    mu = mu_ref[...]
    sig = sig_ref[...]
    mu_mix = mu * lmda + mu2_ref[...] * (1.0 - lmda)
    sig_mix = sig * lmda + sig2_ref[...] * (1.0 - lmda)

    # Per-row scale/shift -> hot path is a single multiply-add per element.
    scale = sig_mix * (1.0 / sig)              # (1, TC, 1), divide is per-row
    shift = mu_mix - mu * scale                # (1, TC, 1)

    # Keep the big elementwise path in bf16 when the input is bf16
    # (packed bf16 VALU on v6e/v7x); otherwise compute in f32.
    compute_dtype = jnp.bfloat16 if x_ref.dtype == jnp.bfloat16 else jnp.float32
    xb = x_ref[...].astype(compute_dtype)
    out = xb * scale.astype(compute_dtype) + shift.astype(compute_dtype)
    o_ref[...] = out.astype(o_ref.dtype)


def _choose_c_tile(C, L, itemsize, budget_bytes=4 << 20):
    """Largest multiple-of-8 channel tile whose x block fits the budget."""
    if C * L * itemsize <= budget_bytes or C <= 8:
        return C
    tc = max(8, min(C, (budget_bytes // (L * itemsize)) // 8 * 8))
    while tc > 8 and C % tc:
        tc -= 8
    return tc if C % tc == 0 else C   # fallback: whole C


@jax.jit
def mixstyle_apply(x, lmda, perm):
    """MixStyle mixing (the module's `mixmixstyle`) via two Pallas passes."""
    B, C, L = x.shape
    TC = _choose_c_tile(C, L, x.dtype.itemsize)
    n_c = C // TC

    # ---- pass 1: per-(b, c) statistics -------------------------------------
    mu, sig = pl.pallas_call(
        _stats_kernel,
        out_shape=(jax.ShapeDtypeStruct((B, C, 1), jnp.float32),
                   jax.ShapeDtypeStruct((B, C, 1), jnp.float32)),
        grid=(B, n_c),
        in_specs=[pl.BlockSpec((1, TC, L), lambda b, c: (b, c, 0))],
        out_specs=(pl.BlockSpec((1, TC, 1), lambda b, c: (b, c, 0)),
                   pl.BlockSpec((1, TC, 1), lambda b, c: (b, c, 0))),
        compiler_params=pltpu.CompilerParams(
            dimension_semantics=("parallel", "parallel")),
    )(x)

    # ---- pass 2: normalize + mix (x read once, permuted stats gathered) ----
    grid_spec = pltpu.PrefetchScalarGridSpec(
        num_scalar_prefetch=1,                    # perm
        grid=(B, n_c),
        in_specs=[
            pl.BlockSpec(memory_space=pltpu.MemorySpace.SMEM),            # lmda (B,)
            pl.BlockSpec((1, TC, L), lambda b, c, perm: (b, c, 0)),        # x[b]
            pl.BlockSpec((1, TC, 1), lambda b, c, perm: (b, c, 0)),        # mu[b]
            pl.BlockSpec((1, TC, 1), lambda b, c, perm: (b, c, 0)),        # sig[b]
            pl.BlockSpec((1, TC, 1), lambda b, c, perm: (perm[b], c, 0)),  # mu[perm[b]]
            pl.BlockSpec((1, TC, 1), lambda b, c, perm: (perm[b], c, 0)),  # sig[perm[b]]
        ],
        out_specs=pl.BlockSpec((1, TC, L), lambda b, c, perm: (b, c, 0)),
    )
    return pl.pallas_call(
        _apply_kernel,
        out_shape=jax.ShapeDtypeStruct((B, C, L), x.dtype),
        grid_spec=grid_spec,
        compiler_params=pltpu.CompilerParams(
            dimension_semantics=("parallel", "parallel")),
    )(perm, lmda, x, mu, sig, mu, sig)


def mixstyle_forward(x, key, p=0.5, alpha=0.1, mix="random",
                     training=True, activated=True):
    """Mirrors MixStyle.forward.  The p-gate uses the host RNG (like the
    PyTorch module's random.random()) so there is no device->host sync."""
    if not training or not activated:
        return x, 0
    if random.random() > p:
        return x, 0

    k_beta, k_perm = jax.random.split(key)
    B = x.shape[0]
    # Keep lmda in float32 regardless of x.dtype (don't degrade the Beta draw).
    lmda = jax.random.beta(k_beta, alpha, alpha, (B,)).astype(jnp.float32)

    if mix == "random":
        perm = jax.random.permutation(k_perm, B).astype(jnp.int32)
    else:
        # TODO(synk): 'crossdomain' / 'random_shift' are pure host-side index
        # shuffles; only 'random' is wired up here.
        raise NotImplementedError(mix)

    # TODO(synk): forward-only; training use needs a custom VJP mirroring the
    # PyTorch .detach() of mu/sig.
    return mixstyle_apply(x, lmda, perm), 1


def _mixstyle_ref(x, lmda, perm, eps=EPS):
    """Pure-JAX reference for verification."""
    mu = jnp.mean(x, axis=2, keepdims=True)
    var = jnp.var(x, axis=2, keepdims=True, ddof=1)   # torch.var unbiased
    sig = jnp.sqrt(var + eps)
    x_normed = (x - mu) / sig
    mu2, sig2 = mu[perm], sig[perm]
    mu_mix = mu * lmda + mu2 * (1.0 - lmda)
    sig_mix = sig * lmda + sig2 * (1.0 - lmda)
    return x_normed * sig_mix + mu_mix


if __name__ == "__main__":
    random.seed(0)
    key = jax.random.PRNGKey(0)
    k_x, k_fwd = jax.random.split(key)

    B, C, L = 4, 8, 16
    x = jax.random.normal(k_x, (B, C, L), dtype=jnp.float32)

    # Deterministic lmda / perm (same split as mixstyle_forward) so the Pallas
    # kernels can be checked against the pure-JAX reference.
    k_beta, k_perm = jax.random.split(k_fwd)
    lmda = jax.random.beta(k_beta, 0.1, 0.1, (B,)).astype(jnp.float32)
    perm = jax.random.permutation(k_perm, B).astype(jnp.int32)

    out = jax.block_until_ready(mixstyle_apply(x, lmda, perm))
    assert out.shape == (B, C, L)

    ref = _mixstyle_ref(x, lmda.reshape(B, 1, 1), perm)
    assert jnp.allclose(out, ref, atol=1e-4, rtol=1e-4), "mismatch vs reference"

    # Exercise the full forward wrapper (p=1.0 so the kernel path runs).
    out2, flag = mixstyle_forward(x, k_fwd, p=1.0, alpha=0.1, mix="random")
    out2 = jax.block_until_ready(out2)
    assert flag == 1 and out2.shape == (B, C, L)
    assert jnp.allclose(out2, ref, atol=1e-4, rtol=1e-4), "wrapper mismatch"

    print("KERNEL_OK")
</pallas_src>

<mosaic_0001>
module attributes {stable_mosaic.version = 11 : i64} {
  func.func @_apply_kernel(%arg0: i32, %arg1: i32, %arg2: memref<4xi32, #tpu.memory_space<smem>>, %arg3: memref<4xf32, #tpu.memory_space<smem>>, %arg4: memref<1x8x16xf32, #tpu.memory_space<vmem>>, %arg5: memref<1x8x1xf32, #tpu.memory_space<vmem>>, %arg6: memref<1x8x1xf32, #tpu.memory_space<vmem>>, %arg7: memref<1x8x1xf32, #tpu.memory_space<vmem>>, %arg8: memref<1x8x1xf32, #tpu.memory_space<vmem>>, %arg9: memref<1x8x16xf32, #tpu.memory_space<vmem>>) attributes {dimension_semantics = [#tpu.dimension_semantics<parallel>, #tpu.dimension_semantics<parallel>], iteration_bounds = array<i64: 4, 1>, scalar_prefetch = 1 : i64, scratch_operands = 0 : i64, tpu.core_type = #tpu.core_type<tc>, window_params = [{transform_indices = @transform_0, window_bounds = array<i64: 4>}, {transform_indices = @transform_1, window_bounds = array<i64: 1, 8, 16>}, {transform_indices = @transform_2, window_bounds = array<i64: 1, 8, 1>}, {transform_indices = @transform_3, window_bounds = array<i64: 1, 8, 1>}, {transform_indices = @transform_4, window_bounds = array<i64: 1, 8, 1>}, {transform_indices = @transform_5, window_bounds = array<i64: 1, 8, 1>}, {transform_indices = @transform_6, window_bounds = array<i64: 1, 8, 16>}]} {
    %0 = arith.index_cast %arg0 : i32 to index
    %1 = memref.load %arg3[%0] : memref<4xf32, #tpu.memory_space<smem>>
    %c0 = arith.constant 0 : index
    %c0_0 = arith.constant 0 : index
    %c0_1 = arith.constant 0 : index
    %2 = vector.load %arg5[%c0, %c0_0, %c0_1] : memref<1x8x1xf32, #tpu.memory_space<vmem>>, vector<1x8x1xf32>
    %c0_2 = arith.constant 0 : index
    %c0_3 = arith.constant 0 : index
    %c0_4 = arith.constant 0 : index
    %3 = vector.load %arg6[%c0_2, %c0_3, %c0_4] : memref<1x8x1xf32, #tpu.memory_space<vmem>>, vector<1x8x1xf32>
    %4 = vector.broadcast %1 : f32 to vector<1x8x1xf32>
    %5 = arith.mulf %2, %4 : vector<1x8x1xf32>
    %c0_5 = arith.constant 0 : index
    %c0_6 = arith.constant 0 : index
    %c0_7 = arith.constant 0 : index
    %6 = vector.load %arg7[%c0_5, %c0_6, %c0_7] : memref<1x8x1xf32, #tpu.memory_space<vmem>>, vector<1x8x1xf32>
    %cst = arith.constant 1.000000e+00 : f32
    %7 = arith.subf %cst, %1 : f32
    %8 = vector.broadcast %7 : f32 to vector<1x8x1xf32>
    %9 = arith.mulf %6, %8 : vector<1x8x1xf32>
    %10 = arith.addf %5, %9 : vector<1x8x1xf32>
    %11 = vector.broadcast %1 : f32 to vector<1x8x1xf32>
    %12 = arith.mulf %3, %11 : vector<1x8x1xf32>
    %c0_8 = arith.constant 0 : index
    %c0_9 = arith.constant 0 : index
    %c0_10 = arith.constant 0 : index
    %13 = vector.load %arg8[%c0_8, %c0_9, %c0_10] : memref<1x8x1xf32, #tpu.memory_space<vmem>>, vector<1x8x1xf32>
    %cst_11 = arith.constant 1.000000e+00 : f32
    %14 = arith.subf %cst_11, %1 : f32
    %15 = vector.broadcast %14 : f32 to vector<1x8x1xf32>
    %16 = arith.mulf %13, %15 : vector<1x8x1xf32>
    %17 = arith.addf %12, %16 : vector<1x8x1xf32>
    %cst_12 = arith.constant 1.000000e+00 : f32
    %18 = vector.broadcast %cst_12 : f32 to vector<1x8x1xf32>
    %19 = arith.divf %18, %3 : vector<1x8x1xf32>
    %20 = arith.mulf %17, %19 : vector<1x8x1xf32>
    %21 = arith.mulf %2, %20 : vector<1x8x1xf32>
    %22 = arith.subf %10, %21 : vector<1x8x1xf32>
    %c0_13 = arith.constant 0 : index
    %c0_14 = arith.constant 0 : index
    %c0_15 = arith.constant 0 : index
    %23 = vector.load %arg4[%c0_13, %c0_14, %c0_15] : memref<1x8x16xf32, #tpu.memory_space<vmem>>, vector<1x8x16xf32>
    %24 = vector.broadcast %20 : vector<1x8x1xf32> to vector<1x8x16xf32>
    %25 = arith.mulf %23, %24 : vector<1x8x16xf32>
    %26 = vector.broadcast %22 : vector<1x8x1xf32> to vector<1x8x16xf32>
    %27 = arith.addf %25, %26 : vector<1x8x16xf32>
    %c0_16 = arith.constant 0 : index
    %c0_17 = arith.constant 0 : index
    %c0_18 = arith.constant 0 : index
    %28 = vector.load %arg9[%c0_16, %c0_17, %c0_18] : memref<1x8x16xf32, #tpu.memory_space<vmem>>, vector<1x8x16xf32>
    tpu.vector_store %arg9[%c0_16, %c0_17, %c0_18], %27 {strides = array<i32>} : memref<1x8x16xf32, #tpu.memory_space<vmem>>, vector<1x8x16xf32>,
    return
  }
  func.func @transform_0(%arg0: i32, %arg1: i32, %arg2: memref<4xi32, #tpu.memory_space<smem>>) -> i32 {
    %c0_i32 = arith.constant 0 : i32
    %c0_i32_0 = arith.constant 0 : i32
    return %c0_i32 : i32
  }
  func.func @transform_1(%arg0: i32, %arg1: i32, %arg2: memref<4xi32, #tpu.memory_space<smem>>) -> (i32, i32, i32) {
    %c0_i32 = arith.constant 0 : i32
    %c0_i32_0 = arith.constant 0 : i32
    return %arg0, %arg1, %c0_i32 : i32, i32, i32
  }
  func.func @transform_2(%arg0: i32, %arg1: i32, %arg2: memref<4xi32, #tpu.memory_space<smem>>) -> (i32, i32, i32) {
    %c0_i32 = arith.constant 0 : i32
    %c0_i32_0 = arith.constant 0 : i32
    return %arg0, %arg1, %c0_i32 : i32, i32, i32
  }
  func.func @transform_3(%arg0: i32, %arg1: i32, %arg2: memref<4xi32, #tpu.memory_space<smem>>) -> (i32, i32, i32) {
    %c0_i32 = arith.constant 0 : i32
    %c0_i32_0 = arith.constant 0 : i32
    return %arg0, %arg1, %c0_i32 : i32, i32, i32
  }
  func.func @transform_4(%arg0: i32, %arg1: i32, %arg2: memref<4xi32, #tpu.memory_space<smem>>) -> (i32, i32, i32) {
    %0 = arith.index_cast %arg0 : i32 to index
    %1 = memref.load %arg2[%0] : memref<4xi32, #tpu.memory_space<smem>>
    %c0_i32 = arith.constant 0 : i32
    %c0_i32_0 = arith.constant 0 : i32
    return %1, %arg1, %c0_i32 : i32, i32, i32
  }
  func.func @transform_5(%arg0: i32, %arg1: i32, %arg2: memref<4xi32, #tpu.memory_space<smem>>) -> (i32, i32, i32) {
    %0 = arith.index_cast %arg0 : i32 to index
    %1 = memref.load %arg2[%0] : memref<4xi32, #tpu.memory_space<smem>>
    %c0_i32 = arith.constant 0 : i32
    %c0_i32_0 = arith.constant 0 : i32
    return %1, %arg1, %c0_i32 : i32, i32, i32
  }
  func.func @transform_6(%arg0: i32, %arg1: i32, %arg2: memref<4xi32, #tpu.memory_space<smem>>) -> (i32, i32, i32) {
    %c0_i32 = arith.constant 0 : i32
    %c0_i32_0 = arith.constant 0 : i32
    return %arg0, %arg1, %c0_i32 : i32, i32, i32
  }
}

module attributes {stable_mosaic.version = 11 : i64} {
  func.func @_stats_kernel(%arg0: i32, %arg1: i32, %arg2: memref<1x8x16xf32, #tpu.memory_space<vmem>>, %arg3: memref<1x8x1xf32, #tpu.memory_space<vmem>>, %arg4: memref<1x8x1xf32, #tpu.memory_space<vmem>>) attributes {dimension_semantics = [#tpu.dimension_semantics<parallel>, #tpu.dimension_semantics<parallel>], iteration_bounds = array<i64: 4, 1>, scalar_prefetch = 0 : i64, scratch_operands = 0 : i64, tpu.core_type = #tpu.core_type<tc>, window_params = [{transform_indices = @transform_0, window_bounds = array<i64: 1, 8, 16>}, {transform_indices = @transform_1, window_bounds = array<i64: 1, 8, 1>}, {transform_indices = @transform_2, window_bounds = array<i64: 1, 8, 1>}]} {
    %c0 = arith.constant 0 : index
    %c0_0 = arith.constant 0 : index
    %c0_1 = arith.constant 0 : index
    %0 = vector.load %arg2[%c0, %c0_0, %c0_1] : memref<1x8x16xf32, #tpu.memory_space<vmem>>, vector<1x8x16xf32>
    %cst = arith.constant dense<0.000000e+00> : vector<1x8xf32>
    %1 = vector.multi_reduction <add>, %0, %cst [2] : vector<1x8x16xf32> to vector<1x8xf32>
    %2 = vector.shape_cast %1 : vector<1x8xf32> to vector<1x8x1xf32>
    %3 = arith.mulf %0, %0 : vector<1x8x16xf32>
    %cst_2 = arith.constant dense<0.000000e+00> : vector<1x8xf32>
    %4 = vector.multi_reduction <add>, %3, %cst_2 [2] : vector<1x8x16xf32> to vector<1x8xf32>
    %5 = vector.shape_cast %4 : vector<1x8xf32> to vector<1x8x1xf32>
    %cst_3 = arith.constant 6.250000e-02 : f32
    %6 = vector.broadcast %cst_3 : f32 to vector<1x8x1xf32>
    %7 = arith.mulf %2, %6 : vector<1x8x1xf32>
    %8 = arith.mulf %2, %7 : vector<1x8x1xf32>
    %9 = arith.subf %5, %8 : vector<1x8x1xf32>
    %cst_4 = arith.constant 0.0666666701 : f32
    %10 = vector.broadcast %cst_4 : f32 to vector<1x8x1xf32>
    %11 = arith.mulf %9, %10 : vector<1x8x1xf32>
    %cst_5 = arith.constant 0.000000e+00 : f32
    %12 = vector.broadcast %cst_5 : f32 to vector<1x8x1xf32>
    %13 = arith.maximumf %11, %12 : vector<1x8x1xf32>
    %c0_6 = arith.constant 0 : index
    %c0_7 = arith.constant 0 : index
    %c0_8 = arith.constant 0 : index
    %14 = vector.load %arg3[%c0_6, %c0_7, %c0_8] : memref<1x8x1xf32, #tpu.memory_space<vmem>>, vector<1x8x1xf32>
    tpu.vector_store %arg3[%c0_6, %c0_7, %c0_8], %7 {strides = array<i32>} : memref<1x8x1xf32, #tpu.memory_space<vmem>>, vector<1x8x1xf32>,
    %cst_9 = arith.constant 9.99999997E-7 : f32
    %15 = vector.broadcast %cst_9 : f32 to vector<1x8x1xf32>
    %16 = arith.addf %13, %15 : vector<1x8x1xf32>
    %17 = math.sqrt %16 : vector<1x8x1xf32>
    %c0_10 = arith.constant 0 : index
    %c0_11 = arith.constant 0 : index
    %c0_12 = arith.constant 0 : index
    %18 = vector.load %arg4[%c0_10, %c0_11, %c0_12] : memref<1x8x1xf32, #tpu.memory_space<vmem>>, vector<1x8x1xf32>
    tpu.vector_store %arg4[%c0_10, %c0_11, %c0_12], %17 {strides = array<i32>} : memref<1x8x1xf32, #tpu.memory_space<vmem>>, vector<1x8x1xf32>,
    return
  }
  func.func @transform_0(%arg0: i32, %arg1: i32) -> (i32, i32, i32) {
    %c0_i32 = arith.constant 0 : i32
    %c0_i32_0 = arith.constant 0 : i32
    return %arg0, %arg1, %c0_i32 : i32, i32, i32
  }
  func.func @transform_1(%arg0: i32, %arg1: i32) -> (i32, i32, i32) {
    %c0_i32 = arith.constant 0 : i32
    %c0_i32_0 = arith.constant 0 : i32
    return %arg0, %arg1, %c0_i32 : i32, i32, i32
  }
  func.func @transform_2(%arg0: i32, %arg1: i32) -> (i32, i32, i32) {
    %c0_i32 = arith.constant 0 : i32
    %c0_i32_0 = arith.constant 0 : i32
    return %arg0, %arg1, %c0_i32 : i32, i32, i32
  }
}

</mosaic_0001>

<llo_original>
// kernel: mixstyle_apply.3
$region0: #{mixstyle_apply.3}
  #allocation0 [shape = 'u32[]', space=smem, size = 0x4, offset = 0x4, fixed_abs, tag = 'smem constant byte address 0x4 - core index']
  #allocation1 [shape = 'u32[72,128]{1,0:T(1,128)}', space=vmem, size = 0x9000, scoped, tag = 'internal scratch']
  #allocation2 [shape = 's32[1]{0}', space=sflag, size = 0x4, scoped, tag = 'scoped memory for mixstyle_apply.3']
  #allocation3 [shape = 'u8[512]{0}', space=smem, size = 0x200, scoped, tag = 'prefetched SMEM operand 0']
  %s0 = inlined_call_operand.vmem [shape: s32[4], index: 0, kind: input, shape index: {}]
  %s1 = inlined_call_operand.vmem [shape: f32[4], index: 1, kind: input, shape index: {}]
  %s2 = inlined_call_operand.hbm [shape: f32[4,8,16], index: 2, kind: input, shape index: {}]
  %s3 = inlined_call_operand.vmem [shape: f32[4,8,1], index: 3, kind: input, shape index: {}, may-alias: {3,5}]
  %s4 = inlined_call_operand.vmem [shape: f32[4,8,1], index: 4, kind: input, shape index: {}, may-alias: {4,6}]
  %s5 = inlined_call_operand.vmem [shape: f32[4,8,1], index: 5, kind: input, shape index: {}, may-alias: {3,5}]
  %s6 = inlined_call_operand.vmem [shape: f32[4,8,1], index: 6, kind: input, shape index: {}, may-alias: {4,6}]
  %s7 = inlined_call_operand.hbm [shape: f32[4,8,16], index: 7, kind: output, shape index: {}]
  %s8 = sld [smem:[#allocation0]]
  $region65: #{mixstyle_apply.3} parent=0
    _
  %s10 = ssub.s32 1, %s8
  %s11 = scalar_select 0, %s10, %s8
  %s13 = sshll.u32 %s0, 4
  %s14 = int_to_ptr.vmem [resolvable:$true] %s13
  %16 = dma.vmem_to_smem %s14, 16, [#allocation3], [#allocation2]
  %18 = dma.done [#allocation2], 16
  %19 = sfence
  $region1: #{mixstyle_apply.3} parent=0
    #allocation4 [shape = 'u8[512]{0}', space=smem, size = 0x200, scoped, tag = 'input window, operand 1, single buffered']
    #allocation5 [shape = 's32[2]{0}', space=sflag, size = 0x8, scoped, tag = 'scoped memory for mixstyle_apply.3']
    #allocation6 [shape = 's32[2]{0}', space=sflag, size = 0x8, scoped, tag = 'scoped memory for mixstyle_apply.3']
    #allocation7 [shape = 's32[2]{0}', space=sflag, size = 0x8, scoped, tag = 'scoped memory for mixstyle_apply.3']
    #allocation8 [shape = 'u8[8192]{0}', space=vmem, size = 0x2000, scoped, tag = 'input window, operand 2']
    #allocation9 [shape = 'u8[8192]{0}', space=vmem, size = 0x2000, scoped, tag = 'output window, operand 0']
    %20 = vsyncpa [#allocation7], 0
    %21 = vsyncpa [#allocation5], 0
    %s22 = scalar_lea.sflag [#allocation5], 1
    %23 = vsyncpa %s22, 0
    %24 = vsyncpa [#allocation6], 0
    %s25 = scalar_lea.sflag [#allocation6], 1
    %26 = vsyncpa %s25, 0
    loop: start=0, step=1, limit=6
    $region2: #{mixstyle_apply.3} parent=1 // loop_pre_header
      _
    $region3: #{mixstyle_apply.3} parent=1 // loop_header
      %s28 = sphi 0, %s32
      %p29 = scmp.ge.s32.totalorder %s28, 6
      %s35 = sphi 0, %s47
      %s36 = sphi 0, %s43
      %s37 = sphi 0, %s35
      %s38 = sphi 0, %s36
      %s39 = sphi 0, %s37
      %s40 = sphi 0, %s38
      %s48 = sphi 0, %s48
      %s50 = sphi 0, %s48
      %s51 = sphi 0, %s50
      %s65 = sphi 0, %s51
      %s73 = sphi 0, %s75
      %s76 = sphi 0, %s73
      %s77 = sphi 0, %s76
      %s93 = sphi 0, %s77
      %s101 = sphi 0, %s103
      %s104 = sphi 0, %s101
      %s105 = sphi 0, %s104
      %s121 = sphi 0, %s105
      %s129 = sphi 0, %s131
      %s132 = sphi 0, %s129
      %s133 = sphi 0, %s132
      %s149 = sphi 0, %s133
      %s159 = sphi 0, %s161
      %s162 = sphi 0, %s159
      %s163 = sphi 0, %s162
      %s179 = sphi 0, %s163
      %s189 = sphi 0, %s191
      %s192 = sphi 0, %s189
      %s193 = sphi 0, %s192
      %s209 = sphi 0, %s193
      %s217 = sphi 0, %s219
      %s220 = sphi 0, %s217
      %s221 = sphi 0, %s220
      %s237 = sphi 0, %s221
    $region4: #{mixstyle_apply.3} parent=1 // loop_header_branch
      %31 = sbr.rel (%p29) target = $region8
    $region5: #{mixstyle_apply.3} parent=1 // loop_body
      %s33 = ssub.s32 %s28, 1
      %s34 = ssub.s32 %s28, 2
      %s41 = sadd.s32 1, %s36
      %p42 = scmp.ge.s32.totalorder %s41, 1
      %s43 = scalar_select %p42, 0, %s41
      %s44 = sadd.s32 1, %s35
      %s45 = scalar_select %p42, %s44, %s35
      %p46 = scmp.ge.s32.totalorder %s45, 4
      %s47 = scalar_select %p46, 0, %s45
      %s49 = sadd.s32 %s48, 1
      %p52 = scmp.eq.s32.totalorder %s28, 3
      %p53 = scmp.ne.s32.totalorder %s48, %s50
      %p54 = scmp.eq.s32.totalorder %s28, 0
      %p55 = por %p53, %p54
      %p56 = scmp.ne.s32.totalorder %s48, %s50
      %p57 = scmp.eq.s32.totalorder %s33, 3
      %p58 = por %p56, %p57
      %p59 = scmp.ne.s32.totalorder %s50, %s51
      %p60 = scmp.eq.s32.totalorder %s33, 0
      %p61 = por %p59, %p60
      %p62 = scmp.ne.s32.totalorder %s50, %s51
      %p63 = scmp.eq.s32.totalorder %s34, 3
      %p64 = por %p62, %p63
      %p66 = scmp.ne.s32.totalorder %s51, %s65
      %p67 = scmp.eq.s32.totalorder %s34, 0
      %p68 = por %p66, %p67
      %s69 = ssub.s32 %s35, %s47
      %s70 = ssub.s32 %s36, %s43
      %s71 = sor.u32 %s69, %s70
      %p72 = scmp.eq.s32.totalorder %s71, 0
      %s74 = sadd.s32 %s73, 1
      %s75 = scalar_select %p72, %s73, %s74
      %p78 = pneg %p72
      %p79 = scmp.eq.s32.totalorder %s28, 3
      %p80 = por %p78, %p79
      %p81 = scmp.ne.s32.totalorder %s73, %s76
      %p82 = scmp.eq.s32.totalorder %s28, 0
      %p83 = por %p81, %p82
      %p84 = scmp.ne.s32.totalorder %s73, %s76
      %p85 = scmp.eq.s32.totalorder %s33, 3
      %p86 = por %p84, %p85
      %p87 = scmp.ne.s32.totalorder %s76, %s77
      %p88 = scmp.eq.s32.totalorder %s33, 0
      %p89 = por %p87, %p88
      %p90 = scmp.ne.s32.totalorder %s76, %s77
      %p91 = scmp.eq.s32.totalorder %s34, 3
      %p92 = por %p90, %p91
      %p94 = scmp.ne.s32.totalorder %s77, %s93
      %p95 = scmp.eq.s32.totalorder %s34, 0
      %p96 = por %p94, %p95
      %s97 = ssub.s32 %s35, %s47
      %s98 = ssub.s32 %s36, %s43
      %s99 = sor.u32 %s97, %s98
      %p100 = scmp.eq.s32.totalorder %s99, 0
      %s102 = sadd.s32 %s101, 1
      %s103 = scalar_select %p100, %s101, %s102
      %p106 = pneg %p100
      %p107 = scmp.eq.s32.totalorder %s28, 3
      %p108 = por %p106, %p107
      %p109 = scmp.ne.s32.totalorder %s101, %s104
      %p110 = scmp.eq.s32.totalorder %s28, 0
      %p111 = por %p109, %p110
      %p112 = scmp.ne.s32.totalorder %s101, %s104
      %p113 = scmp.eq.s32.totalorder %s33, 3
      %p114 = por %p112, %p113
      %p115 = scmp.ne.s32.totalorder %s104, %s105
      %p116 = scmp.eq.s32.totalorder %s33, 0
      %p117 = por %p115, %p116
      %p118 = scmp.ne.s32.totalorder %s104, %s105
      %p119 = scmp.eq.s32.totalorder %s34, 3
      %p120 = por %p118, %p119
      %p122 = scmp.ne.s32.totalorder %s105, %s121
      %p123 = scmp.eq.s32.totalorder %s34, 0
      %p124 = por %p122, %p123
      %s125 = ssub.s32 %s35, %s47
      %s126 = ssub.s32 %s36, %s43
      %s127 = sor.u32 %s125, %s126
      %p128 = scmp.eq.s32.totalorder %s127, 0
      %s130 = sadd.s32 %s129, 1
      %s131 = scalar_select %p128, %s129, %s130
      %p134 = pneg %p128
      %p135 = scmp.eq.s32.totalorder %s28, 3
      %p136 = por %p134, %p135
      %p137 = scmp.ne.s32.totalorder %s129, %s132
      %p138 = scmp.eq.s32.totalorder %s28, 0
      %p139 = por %p137, %p138
      %p140 = scmp.ne.s32.totalorder %s129, %s132
      %p141 = scmp.eq.s32.totalorder %s33, 3
      %p142 = por %p140, %p141
      %p143 = scmp.ne.s32.totalorder %s132, %s133
      %p144 = scmp.eq.s32.totalorder %s33, 0
      %p145 = por %p143, %p144
      %p146 = scmp.ne.s32.totalorder %s132, %s133
      %p147 = scmp.eq.s32.totalorder %s34, 3
      %p148 = por %p146, %p147
      %p150 = scmp.ne.s32.totalorder %s133, %s149
      %p151 = scmp.eq.s32.totalorder %s34, 0
      %p152 = por %p150, %p151
      %s153 = sld [smem:[#allocation3 + %s35]]
      %s154 = sld [smem:[#allocation3 + %s47]]
      %s155 = ssub.s32 %s153, %s154
      %s156 = ssub.s32 %s36, %s43
      %s157 = sor.u32 %s155, %s156
      %p158 = scmp.eq.s32.totalorder %s157, 0
      %s160 = sadd.s32 %s159, 1
      %s161 = scalar_select %p158, %s159, %s160
      %p164 = pneg %p158
      %p165 = scmp.eq.s32.totalorder %s28, 3
      %p166 = por %p164, %p165
      %p167 = scmp.ne.s32.totalorder %s159, %s162
      %p168 = scmp.eq.s32.totalorder %s28, 0
      %p169 = por %p167, %p168
      %p170 = scmp.ne.s32.totalorder %s159, %s162
      %p171 = scmp.eq.s32.totalorder %s33, 3
      %p172 = por %p170, %p171
      %p173 = scmp.ne.s32.totalorder %s162, %s163
      %p174 = scmp.eq.s32.totalorder %s33, 0
      %p175 = por %p173, %p174
      %p176 = scmp.ne.s32.totalorder %s162, %s163
      %p177 = scmp.eq.s32.totalorder %s34, 3
      %p178 = por %p176, %p177
      %p180 = scmp.ne.s32.totalorder %s163, %s179
      %p181 = scmp.eq.s32.totalorder %s34, 0
      %p182 = por %p180, %p181
      %s183 = sld [smem:[#allocation3 + %s35]]
      %s184 = sld [smem:[#allocation3 + %s47]]
      %s185 = ssub.s32 %s183, %s184
      %s186 = ssub.s32 %s36, %s43
      %s187 = sor.u32 %s185, %s186
      %p188 = scmp.eq.s32.totalorder %s187, 0
      %s190 = sadd.s32 %s189, 1
      %s191 = scalar_select %p188, %s189, %s190
      %p194 = pneg %p188
      %p195 = scmp.eq.s32.totalorder %s28, 3
      %p196 = por %p194, %p195
      %p197 = scmp.ne.s32.totalorder %s189, %s192
      %p198 = scmp.eq.s32.totalorder %s28, 0
      %p199 = por %p197, %p198
      %p200 = scmp.ne.s32.totalorder %s189, %s192
      %p201 = scmp.eq.s32.totalorder %s33, 3
      %p202 = por %p200, %p201
      %p203 = scmp.ne.s32.totalorder %s192, %s193
      %p204 = scmp.eq.s32.totalorder %s33, 0
      %p205 = por %p203, %p204
      %p206 = scmp.ne.s32.totalorder %s192, %s193
      %p207 = scmp.eq.s32.totalorder %s34, 3
      %p208 = por %p206, %p207
      %p210 = scmp.ne.s32.totalorder %s193, %s209
      %p211 = scmp.eq.s32.totalorder %s34, 0
      %p212 = por %p210, %p211
      %s213 = ssub.s32 %s35, %s47
      %s214 = ssub.s32 %s36, %s43
      %s215 = sor.u32 %s213, %s214
      %p216 = scmp.eq.s32.totalorder %s215, 0
      %s218 = sadd.s32 %s217, 1
      %s219 = scalar_select %p216, %s217, %s218
      %p222 = pneg %p216
      %p223 = scmp.eq.s32.totalorder %s28, 3
      %p224 = por %p222, %p223
      %p225 = scmp.ne.s32.totalorder %s217, %s220
      %p226 = scmp.eq.s32.totalorder %s28, 0
      %p227 = por %p225, %p226
      %p228 = scmp.ne.s32.totalorder %s217, %s220
      %p229 = scmp.eq.s32.totalorder %s33, 3
      %p230 = por %p228, %p229
      %p231 = scmp.ne.s32.totalorder %s220, %s221
      %p232 = scmp.eq.s32.totalorder %s33, 0
      %p233 = por %p231, %p232
      %p234 = scmp.ne.s32.totalorder %s220, %s221
      %p235 = scmp.eq.s32.totalorder %s34, 3
      %p236 = por %p234, %p235
      %p238 = scmp.ne.s32.totalorder %s221, %s237
      %p239 = scmp.eq.s32.totalorder %s34, 0
      %p240 = por %p238, %p239
      %p241 = scmp.le.s32.totalorder 1, %s28
      %p242 = scmp.lt.s32.totalorder %s28, 5
      %p243 = pnand %p241, %p242
      %p244 = pneg %p243
      // Predicated region
      $region9: #{mixstyle_apply.3} parent=5 // pred_check
        _
      $region10: #{mixstyle_apply.3} parent=5 // pred_check_branch
        %246 = sbr.rel (%p243) target = $region12
      $region11: #{mixstyle_apply.3} parent=5 // pred_region
        %s247 = ssub.s32 %s28, 1
        // Predicated region
        $region13: #{mixstyle_apply.3} parent=11 // pred_check
          %p248 = pneg %p61
        $region14: #{mixstyle_apply.3} parent=11 // pred_check_branch
          %250 = sbr.rel (%p248) target = $region16
        $region15: #{mixstyle_apply.3} parent=11 // pred_region
          %252 = vsyncadd [#allocation7], 0
          %s254 = sshll.u32 %s1, 4
          %s255 = int_to_ptr.vmem [resolvable:$true] %s254
          %257 = dma.vmem_to_smem %s255, 16, [#allocation4], [#allocation7]
        $region16: #{mixstyle_apply.3} parent=11 // pred_fallthru
          _
      $region12: #{mixstyle_apply.3} parent=5 // pred_fallthru
        _
      %p258 = scmp.lt.s32.totalorder %s28, 4
      // Predicated region
      $region17: #{mixstyle_apply.3} parent=5 // pred_check
        %p259 = pneg %p258
      $region18: #{mixstyle_apply.3} parent=5 // pred_check_branch
        %261 = sbr.rel (%p259) target = $region20
      $region19: #{mixstyle_apply.3} parent=5 // pred_region
        // Predicated region
        $region21: #{mixstyle_apply.3} parent=19 // pred_check
          %p262 = pneg %p83
        $region22: #{mixstyle_apply.3} parent=19 // pred_check_branch
          %264 = sbr.rel (%p262) target = $region24
        $region23: #{mixstyle_apply.3} parent=19 // pred_region
          %s265 = sand.u32 %s73, 1
          %s266 = scalar_lea.sflag [#allocation5], %s265
          %s267 = sand.u32 %s73, 1
          %s268 = smul.addr %s267, 8
          %s269 = scalar_lea.vmem [#allocation8], %s268
          %271 = vsyncadd %s266, 0
          %s272 = sadd.s32 %s36, %s35
          %s273 = smul.addr %s272, 8
          %s274 = scalar_lea.hbm %s2, %s273
          %s276 = sshll.u32 %s274, 4
          %s277 = int_to_ptr.hbm [resolvable:$true] %s276
          %s278 = sshll.u32 %s269, 4
          %s279 = int_to_ptr.vmem [resolvable:$true] %s278
          %281 = dma.hbm_to_vmem [thread:$0]  %s277, 128, %s279, %s266
        $region24: #{mixstyle_apply.3} parent=19 // pred_fallthru
          _
        // Predicated region
        $region25: #{mixstyle_apply.3} parent=19 // pred_check
          %p282 = pneg %p111
        $region26: #{mixstyle_apply.3} parent=19 // pred_check_branch
          %284 = sbr.rel (%p282) target = $region28
        $region27: #{mixstyle_apply.3} parent=19 // pred_region
          %p285 = scmp.lt.s32.totalorder %s35, 3
          %s286 = scalar_select %p285, %s35, 3
          %p287 = scmp.lt.s32.totalorder %s36, 0
          %s288 = scalar_select %p287, %s36, 0
          %s289 = sadd.s32 %s288, %s286
          %s290 = smul.addr %s289, 8
          %s291 = scalar_lea.vmem %s3, %s290
        $region28: #{mixstyle_apply.3} parent=19 // pred_fallthru
          _
        // Predicated region
        $region29: #{mixstyle_apply.3} parent=19 // pred_check
          %p292 = pneg %p139
        $region30: #{mixstyle_apply.3} parent=19 // pred_check_branch
          %294 = sbr.rel (%p292) target = $region32
        $region31: #{mixstyle_apply.3} parent=19 // pred_region
          %p295 = scmp.lt.s32.totalorder %s35, 3
          %s296 = scalar_select %p295, %s35, 3
          %p297 = scmp.lt.s32.totalorder %s36, 0
          %s298 = scalar_select %p297, %s36, 0
          %s299 = sadd.s32 %s298, %s296
          %s300 = smul.addr %s299, 8
          %s301 = scalar_lea.vmem %s4, %s300
        $region32: #{mixstyle_apply.3} parent=19 // pred_fallthru
          _
        // Predicated region
        $region33: #{mixstyle_apply.3} parent=19 // pred_check
          %p302 = pneg %p169
        $region34: #{mixstyle_apply.3} parent=19 // pred_check_branch
          %304 = sbr.rel (%p302) target = $region36
        $region35: #{mixstyle_apply.3} parent=19 // pred_region
          %s305 = sld [smem:[#allocation3 + %s35]]
          %p306 = scmp.lt.s32.totalorder %s305, 3
          %s307 = scalar_select %p306, %s305, 3
          %p308 = scmp.lt.s32.totalorder %s36, 0
          %s309 = scalar_select %p308, %s36, 0
          %s310 = sadd.s32 %s309, %s307
          %s311 = smul.addr %s310, 8
          %s312 = scalar_lea.vmem %s5, %s311
          %s313 = sld [smem:[#allocation3 + %s35]]
        $region36: #{mixstyle_apply.3} parent=19 // pred_fallthru
          _
        // Predicated region
        $region37: #{mixstyle_apply.3} parent=19 // pred_check
          %p314 = pneg %p199
        $region38: #{mixstyle_apply.3} parent=19 // pred_check_branch
          %316 = sbr.rel (%p314) target = $region40
        $region39: #{mixstyle_apply.3} parent=19 // pred_region
          %s317 = sld [smem:[#allocation3 + %s35]]
          %p318 = scmp.lt.s32.totalorder %s317, 3
          %s319 = scalar_select %p318, %s317, 3
          %p320 = scmp.lt.s32.totalorder %s36, 0
          %s321 = scalar_select %p320, %s36, 0
          %s322 = sadd.s32 %s321, %s319
          %s323 = smul.addr %s322, 8
          %s324 = scalar_lea.vmem %s6, %s323
          %s325 = sld [smem:[#allocation3 + %s35]]
        $region40: #{mixstyle_apply.3} parent=19 // pred_fallthru
          _
      $region20: #{mixstyle_apply.3} parent=5 // pred_fallthru
        _
      %p326 = scmp.le.s32.totalorder 1, %s28
      %p327 = scmp.lt.s32.totalorder %s28, 5
      %p328 = pnand %p326, %p327
      %p329 = pneg %p328
      // Predicated region
      $region41: #{mixstyle_apply.3} parent=5 // pred_check
        _
      $region42: #{mixstyle_apply.3} parent=5 // pred_check_branch
        %331 = sbr.rel (%p328) target = $region44
      $region43: #{mixstyle_apply.3} parent=5 // pred_region
        %s332 = ssub.s32 %s28, 1
        // Predicated region
        $region45: #{mixstyle_apply.3} parent=43 // pred_check
          %p333 = pneg %p61
        $region46: #{mixstyle_apply.3} parent=43 // pred_check_branch
          %335 = sbr.rel (%p333) target = $region48
        $region47: #{mixstyle_apply.3} parent=43 // pred_region
          %337 = dma.done [#allocation7], 16
        $region48: #{mixstyle_apply.3} parent=43 // pred_fallthru
          _
        %s338 = sand.u32 %s76, 1
        %s339 = scalar_lea.sflag [#allocation5], %s338
        %s340 = sand.u32 %s76, 1
        %s341 = smul.addr %s340, 8
        %s342 = scalar_lea.vmem [#allocation8], %s341
        // Predicated region
        $region49: #{mixstyle_apply.3} parent=43 // pred_check
          %p343 = pneg %p89
        $region50: #{mixstyle_apply.3} parent=43 // pred_check_branch
          %345 = sbr.rel (%p343) target = $region52
        $region51: #{mixstyle_apply.3} parent=43 // pred_region
          %347 = dma.done %s339, 128
        $region52: #{mixstyle_apply.3} parent=43 // pred_fallthru
          _
        %348 = sfence
        %p349 = pneg %p61
        %p350 = pneg %p58
        %s351 = sand.u32 %s76, 1
        %s352 = scalar_lea.sflag [#allocation5], %s351
        %s353 = sand.u32 %s76, 1
        %s354 = smul.addr %s353, 8
        %s355 = scalar_lea.vmem [#allocation8], %s354
        %p356 = pneg %p89
        %p357 = pneg %p86
        %p358 = scmp.lt.s32.totalorder %s37, 3
        %s359 = scalar_select %p358, %s37, 3
        %p360 = scmp.lt.s32.totalorder %s38, 0
        %s361 = scalar_select %p360, %s38, 0
        %s362 = sadd.s32 %s361, %s359
        %s363 = smul.addr %s362, 8
        %s364 = scalar_lea.vmem %s3, %s363
        %p365 = pneg %p117
        %p366 = pneg %p114
        %p367 = scmp.lt.s32.totalorder %s37, 3
        %s368 = scalar_select %p367, %s37, 3
        %p369 = scmp.lt.s32.totalorder %s38, 0
        %s370 = scalar_select %p369, %s38, 0
        %s371 = sadd.s32 %s370, %s368
        %s372 = smul.addr %s371, 8
        %s373 = scalar_lea.vmem %s4, %s372
        %p374 = pneg %p145
        %p375 = pneg %p142
        %s376 = sld [smem:[#allocation3 + %s37]]
        %p377 = scmp.lt.s32.totalorder %s376, 3
        %s378 = scalar_select %p377, %s376, 3
        %p379 = scmp.lt.s32.totalorder %s38, 0
        %s380 = scalar_select %p379, %s38, 0
        %s381 = sadd.s32 %s380, %s378
        %s382 = smul.addr %s381, 8
        %s383 = scalar_lea.vmem %s5, %s382
        %p384 = pneg %p175
        %p385 = pneg %p172
        %s386 = sld [smem:[#allocation3 + %s37]]
        %p387 = scmp.lt.s32.totalorder %s386, 3
        %s388 = scalar_select %p387, %s386, 3
        %p389 = scmp.lt.s32.totalorder %s38, 0
        %s390 = scalar_select %p389, %s38, 0
        %s391 = sadd.s32 %s390, %s388
        %s392 = smul.addr %s391, 8
        %s393 = scalar_lea.vmem %s6, %s392
        %p394 = pneg %p205
        %p395 = pneg %p202
        %p396 = pneg %p233
        %p397 = pneg %p230
        %s398 = sand.u32 %s220, 1
        %s399 = scalar_lea.sflag [#allocation6], %s398
        %s400 = sand.u32 %s220, 1
        %s401 = smul.addr %s400, 8
        %s402 = scalar_lea.vmem [#allocation9], %s401
        %p403 = scmp.lt.s32.totalorder %s37, 3
        %s404 = scalar_select %p403, %s37, 3
        %p405 = scmp.lt.s32.totalorder %s38, 0
        %s406 = scalar_select %p405, %s38, 0
        %s407 = sadd.s32 %s406, %s404
        %s408 = smul.addr %s407, 8
        %s409 = scalar_lea.vmem %s3, %s408
        %p410 = scmp.lt.s32.totalorder %s37, 3
        %s411 = scalar_select %p410, %s37, 3
        %p412 = scmp.lt.s32.totalorder %s38, 0
        %s413 = scalar_select %p412, %s38, 0
        %s414 = sadd.s32 %s413, %s411
        %s415 = smul.addr %s414, 8
        %s416 = scalar_lea.vmem %s4, %s415
        %s417 = sld [smem:[#allocation3 + %s37]]
        %p418 = scmp.lt.s32.totalorder %s417, 3
        %s419 = scalar_select %p418, %s417, 3
        %p420 = scmp.lt.s32.totalorder %s38, 0
        %s421 = scalar_select %p420, %s38, 0
        %s422 = sadd.s32 %s421, %s419
        %s423 = smul.addr %s422, 8
        %s424 = scalar_lea.vmem %s5, %s423
        %s425 = sld [smem:[#allocation3 + %s37]]
        %s426 = sld [smem:[#allocation3 + %s37]]
        %p427 = scmp.lt.s32.totalorder %s426, 3
        %s428 = scalar_select %p427, %s426, 3
        %p429 = scmp.lt.s32.totalorder %s38, 0
        %s430 = scalar_select %p429, %s38, 0
        %s431 = sadd.s32 %s430, %s428
        %s432 = smul.addr %s431, 8
        %s433 = scalar_lea.vmem %s6, %s432
        %s434 = sld [smem:[#allocation3 + %s37]]
        %s435 = sld [smem:[#allocation4 + %s37]]
        %v436 = vld [vmem:[%s409] sm:$0xff]
        %v437 = vld [vmem:[%s416] sm:$0xff]
        %v438 = vstv %s435
        %v439 = vmul.f32 %v436, %v438
        %v440 = vld [vmem:[%s424] sm:$0xff]
        %s441 = ssub.f32 1.0, %s435
        %v442 = vstv %s441
        %v443 = vmul.f32 %v440, %v442
        %v444 = vadd.f32 %v439, %v443
        %v445 = vmul.f32 %v437, %v438
        %v446 = vld [vmem:[%s433] sm:$0xff]
        %v447 = vmul.f32 %v446, %v442
        %v448 = vadd.f32 %v445, %v447
        %v449 = vrcp.pop %v437
        %v450 = vmul.f32 %v437, %v449
        %v451 = vsub.f32 1.0, %v450
        %v452 = vmul.f32 %v449, %v451
        %v453 = vadd.f32 %v449, %v452
        %vm454 = vweird.f32 %v437
        %vm455 = vweird.f32 %v449
        %vm456 = vmor %vm454, %vm455
        %v457 = vsel %vm456, %v449, %v453
        %v458 = vand.u32 2147483647, %v437
        %vm459 = vcmp.eq.f32.partialorder %v458, 8.507059e+37
        %v460 = vand.u32 %v437, 2147483648
        %v461 = vor.u32 1.1754944e-38, %v460
        %v462 = vsel %vm459, %v461, %v457
        %v463 = vmul.f32 1.0, %v462
        %v464 = vmul.f32 %v448, %v463
        %v465 = vmul.f32 %v436, %v464
        %v466 = vsub.f32 %v444, %v465
        %v467 = vld [vmem:[%s342] sm:$0xff]
        %469 = vset.pattern.permute.xlu0 0
        %470 = vperm.xlu0 %469, %v464
        %v471 = vpop.permute.xlu0 %470
        %v473 = vmul.f32 %v467, %v471
        %475 = vset.pattern.permute.xlu0 0
        %476 = vperm.xlu0 %475, %v466
        %v477 = vpop.permute.xlu0 %476
        %v479 = vadd.f32 %v473, %v477
        %vm480 = vcmask 130048
        %481 = vst.msk [vmem:[%s402] sm:$0xff] %vm480, %v479
        %s482 = sand.u32 %s220, 1
        %s483 = scalar_lea.sflag [#allocation6], %s482
        %s484 = sand.u32 %s220, 1
        %s485 = smul.addr %s484, 8
        %s486 = scalar_lea.vmem [#allocation9], %s485
        // Predicated region
        $region53: #{mixstyle_apply.3} parent=43 // pred_check
          %p487 = pneg %p230
        $region54: #{mixstyle_apply.3} parent=43 // pred_check_branch
          %489 = sbr.rel (%p487) target = $region56
        $region55: #{mixstyle_apply.3} parent=43 // pred_region
          %491 = vsyncadd %s483, 0
          %s492 = sadd.s32 %s38, %s37
          %s493 = smul.addr %s492, 8
          %s494 = scalar_lea.hbm %s7, %s493
          %s496 = sshll.u32 %s486, 4
          %s497 = int_to_ptr.vmem [resolvable:$true] %s496
          %s498 = sshll.u32 %s494, 4
          %s499 = int_to_ptr.hbm [resolvable:$true] %s498
          %501 = dma.vmem_to_hbm [thread:$0]  %s497, 128, %s499, %s483
        $region56: #{mixstyle_apply.3} parent=43 // pred_fallthru
          _
      $region44: #{mixstyle_apply.3} parent=5 // pred_fallthru
        _
      %p502 = scmp.le.s32.totalorder 2, %s28
      // Predicated region
      $region57: #{mixstyle_apply.3} parent=5 // pred_check
        %p503 = pneg %p502
      $region58: #{mixstyle_apply.3} parent=5 // pred_check_branch
        %505 = sbr.rel (%p503) target = $region60
      $region59: #{mixstyle_apply.3} parent=5 // pred_region
        %s506 = ssub.s32 %s28, 2
        // Predicated region
        $region61: #{mixstyle_apply.3} parent=59 // pred_check
          %p507 = pneg %p236
        $region62: #{mixstyle_apply.3} parent=59 // pred_check_branch
          %509 = sbr.rel (%p507) target = $region64
        $region63: #{mixstyle_apply.3} parent=59 // pred_region
          %s510 = sand.u32 %s221, 1
          %s511 = scalar_lea.sflag [#allocation6], %s510
          %s512 = sand.u32 %s221, 1
          %s513 = smul.addr %s512, 8
          %s514 = scalar_lea.vmem [#allocation9], %s513
          %516 = dma.done %s511, 128
        $region64: #{mixstyle_apply.3} parent=59 // pred_fallthru
          _
      $region60: #{mixstyle_apply.3} parent=5 // pred_fallthru
        _
    $region6: #{mixstyle_apply.3} parent=1 // loop_footer
      %s32 = sadd.s32 1, %s28
    $region7: #{mixstyle_apply.3} parent=1 // loop_footer_branch
      %27 = sbr.rel target = $region3
    $region8: #{mixstyle_apply.3} parent=1 // loop_exit
      _
    %517 = vsyncpa [#allocation5], 1
    %s518 = scalar_lea.sflag [#allocation5], 1
    %519 = vsyncpa %s518, 1
    %520 = vsyncpa [#allocation6], 1
    %s521 = scalar_lea.sflag [#allocation6], 1
    %522 = vsyncpa %s521, 1
    %523 = vsyncpa [#allocation7], 1
    %s524 = scalar_lea.sflag [#allocation7], 1
    %525 = vsyncpa %s524, 1

// kernel: mixstyle_apply.2
$region0: #{mixstyle_apply.2}
  #allocation0 [shape = 'u32[]', space=smem, size = 0x4, offset = 0x4, fixed_abs, tag = 'smem constant byte address 0x4 - core index']
  #allocation1 [shape = 'u32[72,128]{1,0:T(1,128)}', space=vmem, size = 0x9000, scoped, tag = 'internal scratch']
  %s0 = inlined_call_operand.hbm [shape: f32[4,8,16], index: 0, kind: input, shape index: {}]
  %s1 = inlined_call_operand.vmem [shape: f32[4,8,1], index: 1, kind: output, shape index: {0}]
  %s2 = inlined_call_operand.vmem [shape: f32[4,8,1], index: 2, kind: output, shape index: {1}]
  %3 = xla_tuple %s1, %s2
  %s4 = sld [smem:[#allocation0]]
  $region49: #{mixstyle_apply.2} parent=0
    _
  %s6 = ssub.s32 1, %s4
  %s7 = scalar_select 0, %s6, %s4
  $region1: #{mixstyle_apply.2} parent=0
    #allocation2 [shape = 'u8[8192]{0}', space=vmem, size = 0x2000, scoped, tag = 'input window, operand 0']
    #allocation3 [shape = 's32[2]{0}', space=sflag, size = 0x8, scoped, tag = 'scoped memory for mixstyle_apply.2']
    %8 = vsyncpa [#allocation3], 0
    %s9 = scalar_lea.sflag [#allocation3], 1
    %10 = vsyncpa %s9, 0
    loop: start=0, step=1, limit=6
    $region2: #{mixstyle_apply.2} parent=1 // loop_pre_header
      _
    $region3: #{mixstyle_apply.2} parent=1 // loop_header
      %s12 = sphi 0, %s16
      %p13 = scmp.ge.s32.totalorder %s12, 6
      %s19 = sphi 0, %s31
      %s20 = sphi 0, %s27
      %s21 = sphi 0, %s19
      %s22 = sphi 0, %s20
      %s23 = sphi 0, %s21
      %s24 = sphi 0, %s22
      %s36 = sphi 0, %s38
      %s39 = sphi 0, %s36
      %s40 = sphi 0, %s39
      %s56 = sphi 0, %s40
      %s64 = sphi 0, %s66
      %s67 = sphi 0, %s64
      %s68 = sphi 0, %s67
      %s84 = sphi 0, %s68
      %s92 = sphi 0, %s94
      %s95 = sphi 0, %s92
      %s96 = sphi 0, %s95
      %s112 = sphi 0, %s96
    $region4: #{mixstyle_apply.2} parent=1 // loop_header_branch
      %15 = sbr.rel (%p13) target = $region8
    $region5: #{mixstyle_apply.2} parent=1 // loop_body
      %s17 = ssub.s32 %s12, 1
      %s18 = ssub.s32 %s12, 2
      %s25 = sadd.s32 1, %s20
      %p26 = scmp.ge.s32.totalorder %s25, 1
      %s27 = scalar_select %p26, 0, %s25
      %s28 = sadd.s32 1, %s19
      %s29 = scalar_select %p26, %s28, %s19
      %p30 = scmp.ge.s32.totalorder %s29, 4
      %s31 = scalar_select %p30, 0, %s29
      %s32 = ssub.s32 %s19, %s31
      %s33 = ssub.s32 %s20, %s27
      %s34 = sor.u32 %s32, %s33
      %p35 = scmp.eq.s32.totalorder %s34, 0
      %s37 = sadd.s32 %s36, 1
      %s38 = scalar_select %p35, %s36, %s37
      %p41 = pneg %p35
      %p42 = scmp.eq.s32.totalorder %s12, 3
      %p43 = por %p41, %p42
      %p44 = scmp.ne.s32.totalorder %s36, %s39
      %p45 = scmp.eq.s32.totalorder %s12, 0
      %p46 = por %p44, %p45
      %p47 = scmp.ne.s32.totalorder %s36, %s39
      %p48 = scmp.eq.s32.totalorder %s17, 3
      %p49 = por %p47, %p48
      %p50 = scmp.ne.s32.totalorder %s39, %s40
      %p51 = scmp.eq.s32.totalorder %s17, 0
      %p52 = por %p50, %p51
      %p53 = scmp.ne.s32.totalorder %s39, %s40
      %p54 = scmp.eq.s32.totalorder %s18, 3
      %p55 = por %p53, %p54
      %p57 = scmp.ne.s32.totalorder %s40, %s56
      %p58 = scmp.eq.s32.totalorder %s18, 0
      %p59 = por %p57, %p58
      %s60 = ssub.s32 %s19, %s31
      %s61 = ssub.s32 %s20, %s27
      %s62 = sor.u32 %s60, %s61
      %p63 = scmp.eq.s32.totalorder %s62, 0
      %s65 = sadd.s32 %s64, 1
      %s66 = scalar_select %p63, %s64, %s65
      %p69 = pneg %p63
      %p70 = scmp.eq.s32.totalorder %s12, 3
      %p71 = por %p69, %p70
      %p72 = scmp.ne.s32.totalorder %s64, %s67
      %p73 = scmp.eq.s32.totalorder %s12, 0
      %p74 = por %p72, %p73
      %p75 = scmp.ne.s32.totalorder %s64, %s67
      %p76 = scmp.eq.s32.totalorder %s17, 3
      %p77 = por %p75, %p76
      %p78 = scmp.ne.s32.totalorder %s67, %s68
      %p79 = scmp.eq.s32.totalorder %s17, 0
      %p80 = por %p78, %p79
      %p81 = scmp.ne.s32.totalorder %s67, %s68
      %p82 = scmp.eq.s32.totalorder %s18, 3
      %p83 = por %p81, %p82
      %p85 = scmp.ne.s32.totalorder %s68, %s84
      %p86 = scmp.eq.s32.totalorder %s18, 0
      %p87 = por %p85, %p86
      %s88 = ssub.s32 %s19, %s31
      %s89 = ssub.s32 %s20, %s27
      %s90 = sor.u32 %s88, %s89
      %p91 = scmp.eq.s32.totalorder %s90, 0
      %s93 = sadd.s32 %s92, 1
      %s94 = scalar_select %p91, %s92, %s93
      %p97 = pneg %p91
      %p98 = scmp.eq.s32.totalorder %s12, 3
      %p99 = por %p97, %p98
      %p100 = scmp.ne.s32.totalorder %s92, %s95
      %p101 = scmp.eq.s32.totalorder %s12, 0
      %p102 = por %p100, %p101
      %p103 = scmp.ne.s32.totalorder %s92, %s95
      %p104 = scmp.eq.s32.totalorder %s17, 3
      %p105 = por %p103, %p104
      %p106 = scmp.ne.s32.totalorder %s95, %s96
      %p107 = scmp.eq.s32.totalorder %s17, 0
      %p108 = por %p106, %p107
      %p109 = scmp.ne.s32.totalorder %s95, %s96
      %p110 = scmp.eq.s32.totalorder %s18, 3
      %p111 = por %p109, %p110
      %p113 = scmp.ne.s32.totalorder %s96, %s112
      %p114 = scmp.eq.s32.totalorder %s18, 0
      %p115 = por %p113, %p114
      %p116 = scmp.le.s32.totalorder 1, %s12
      %p117 = scmp.lt.s32.totalorder %s12, 5
      %p118 = pnand %p116, %p117
      %p119 = pneg %p118
      // Predicated region
      $region9: #{mixstyle_apply.2} parent=5 // pred_check
        _
      $region10: #{mixstyle_apply.2} parent=5 // pred_check_branch
        %121 = sbr.rel (%p118) target = $region12
      $region11: #{mixstyle_apply.2} parent=5 // pred_region
        %s122 = ssub.s32 %s12, 1
      $region12: #{mixstyle_apply.2} parent=5 // pred_fallthru
        _
      %p123 = scmp.lt.s32.totalorder %s12, 4
      // Predicated region
      $region13: #{mixstyle_apply.2} parent=5 // pred_check
        %p124 = pneg %p123
      $region14: #{mixstyle_apply.2} parent=5 // pred_check_branch
        %126 = sbr.rel (%p124) target = $region16
      $region15: #{mixstyle_apply.2} parent=5 // pred_region
        // Predicated region
        $region17: #{mixstyle_apply.2} parent=15 // pred_check
          %p127 = pneg %p46
        $region18: #{mixstyle_apply.2} parent=15 // pred_check_branch
          %129 = sbr.rel (%p127) target = $region20
        $region19: #{mixstyle_apply.2} parent=15 // pred_region
          %s130 = sand.u32 %s36, 1
          %s131 = scalar_lea.sflag [#allocation3], %s130
          %s132 = sand.u32 %s36, 1
          %s133 = smul.addr %s132, 8
          %s134 = scalar_lea.vmem [#allocation2], %s133
          %136 = vsyncadd %s131, 0
          %s137 = sadd.s32 %s20, %s19
          %s138 = smul.addr %s137, 8
          %s139 = scalar_lea.hbm %s0, %s138
          %s141 = sshll.u32 %s139, 4
          %s142 = int_to_ptr.hbm [resolvable:$true] %s141
          %s143 = sshll.u32 %s134, 4
          %s144 = int_to_ptr.vmem [resolvable:$true] %s143
          %146 = dma.hbm_to_vmem [thread:$0]  %s142, 128, %s144, %s131
        $region20: #{mixstyle_apply.2} parent=15 // pred_fallthru
          _
      $region16: #{mixstyle_apply.2} parent=5 // pred_fallthru
        _
      %p147 = scmp.le.s32.totalorder 1, %s12
      %p148 = scmp.lt.s32.totalorder %s12, 5
      %p149 = pnand %p147, %p148
      %p150 = pneg %p149
      // Predicated region
      $region21: #{mixstyle_apply.2} parent=5 // pred_check
        _
      $region22: #{mixstyle_apply.2} parent=5 // pred_check_branch
        %152 = sbr.rel (%p149) target = $region24
      $region23: #{mixstyle_apply.2} parent=5 // pred_region
        %s153 = ssub.s32 %s12, 1
        %s154 = sand.u32 %s39, 1
        %s155 = scalar_lea.sflag [#allocation3], %s154
        %s156 = sand.u32 %s39, 1
        %s157 = smul.addr %s156, 8
        %s158 = scalar_lea.vmem [#allocation2], %s157
        // Predicated region
        $region25: #{mixstyle_apply.2} parent=23 // pred_check
          %p159 = pneg %p52
        $region26: #{mixstyle_apply.2} parent=23 // pred_check_branch
          %161 = sbr.rel (%p159) target = $region28
        $region27: #{mixstyle_apply.2} parent=23 // pred_region
          %163 = dma.done %s155, 128
        $region28: #{mixstyle_apply.2} parent=23 // pred_fallthru
          _
        %s164 = sand.u32 %s39, 1
        %s165 = scalar_lea.sflag [#allocation3], %s164
        %s166 = sand.u32 %s39, 1
        %s167 = smul.addr %s166, 8
        %s168 = scalar_lea.vmem [#allocation2], %s167
        %p169 = pneg %p52
        %p170 = pneg %p49
        %p171 = pneg %p80
        %p172 = pneg %p77
        %p173 = scmp.lt.s32.totalorder %s21, 3
        %s174 = scalar_select %p173, %s21, 3
        %p175 = scmp.lt.s32.totalorder %s22, 0
        %s176 = scalar_select %p175, %s22, 0
        %s177 = sadd.s32 %s176, %s174
        %s178 = smul.addr %s177, 8
        %s179 = scalar_lea.vmem %s1, %s178
        %p180 = pneg %p108
        %p181 = pneg %p105
        %p182 = scmp.lt.s32.totalorder %s21, 3
        %s183 = scalar_select %p182, %s21, 3
        %p184 = scmp.lt.s32.totalorder %s22, 0
        %s185 = scalar_select %p184, %s22, 0
        %s186 = sadd.s32 %s185, %s183
        %s187 = smul.addr %s186, 8
        %s188 = scalar_lea.vmem %s2, %s187
        %p189 = scmp.lt.s32.totalorder %s21, 3
        %s190 = scalar_select %p189, %s21, 3
        %p191 = scmp.lt.s32.totalorder %s22, 0
        %s192 = scalar_select %p191, %s22, 0
        %s193 = sadd.s32 %s192, %s190
        %s194 = smul.addr %s193, 8
        %s195 = scalar_lea.vmem %s1, %s194
        %p196 = scmp.lt.s32.totalorder %s21, 3
        %s197 = scalar_select %p196, %s21, 3
        %p198 = scmp.lt.s32.totalorder %s22, 0
        %s199 = scalar_select %p198, %s22, 0
        %s200 = sadd.s32 %s199, %s197
        %s201 = smul.addr %s200, 8
        %s202 = scalar_lea.vmem %s2, %s201
        %v203 = vld [vmem:[%s158] sm:$0xff]
        %vm204 = vcmask 130048
        %v205 = vsel %vm204, %v203, 0.0
        %206 = vadd.xlane.f32.xlu0 %v205
        %v207 = vpop.xlane.xlu0 %206
        %v208 = vmul.f32 %v203, %v203
        %v209 = vsel %vm204, %v208, 0.0
        %210 = vadd.xlane.f32.xlu0 %v209
        %v211 = vpop.xlane.xlu0 %210
        %v212 = vmul.f32 %v207, 0.0625
        %v213 = vmul.f32 %v207, %v212
        %v214 = vsub.f32 %v211, %v213
        %v215 = vmul.f32 %v214, 0.06666667
        %v216 = vmax.f32 %v215, 0.0
        %vm217 = vcmask 7168
        %218 = vst.msk [vmem:[%s195] sm:$0xff] %vm217, %v212
        %v219 = vadd.f32 %v216, 1e-06
        %v220 = vrsqrt.pop %v219
        %v221 = vmul.f32 %v220, %v219
        %v222 = vmul.f32 %v221, %v220
        %v223 = vmul.f32 0.5, %v222
        %v224 = vsub.f32 1.5, %v223
        %v225 = vmul.f32 %v220, %v224
        %v226 = vmul.f32 %v219, %v225
        %vm227 = vcmp.eq.f32.partialorder %v219, inf
        %v228 = vsel %vm227, %v219, %v226
        %vm229 = vcmp.eq.f32.partialorder %v219, 0.0
        %v230 = vand.u32 %v219, 2147483648
        %v231 = vsel %vm229, %v230, %v228
        %232 = vst.msk [vmem:[%s202] sm:$0xff] %vm217, %v231
        %p233 = scmp.lt.s32.totalorder %s21, 3
        %s234 = scalar_select %p233, %s21, 3
        %p235 = scmp.lt.s32.totalorder %s22, 0
        %s236 = scalar_select %p235, %s22, 0
        %s237 = sadd.s32 %s236, %s234
        %s238 = smul.addr %s237, 8
        %s239 = scalar_lea.vmem %s1, %s238
        %p240 = scmp.lt.s32.totalorder %s21, 3
        %s241 = scalar_select %p240, %s21, 3
        %p242 = scmp.lt.s32.totalorder %s22, 0
        %s243 = scalar_select %p242, %s22, 0
        %s244 = sadd.s32 %s243, %s241
        %s245 = smul.addr %s244, 8
        %s246 = scalar_lea.vmem %s2, %s245
        // Predicated region
        $region29: #{mixstyle_apply.2} parent=23 // pred_check
          %p247 = pneg %p77
        $region30: #{mixstyle_apply.2} parent=23 // pred_check_branch
          %249 = sbr.rel (%p247) target = $region32
        $region31: #{mixstyle_apply.2} parent=23 // pred_region
          _
        $region32: #{mixstyle_apply.2} parent=23 // pred_fallthru
          _
        // Predicated region
        $region33: #{mixstyle_apply.2} parent=23 // pred_check
          %p250 = pneg %p105
        $region34: #{mixstyle_apply.2} parent=23 // pred_check_branch
          %252 = sbr.rel (%p250) target = $region36
        $region35: #{mixstyle_apply.2} parent=23 // pred_region
          _
        $region36: #{mixstyle_apply.2} parent=23 // pred_fallthru
          _
      $region24: #{mixstyle_apply.2} parent=5 // pred_fallthru
        _
      %p253 = scmp.le.s32.totalorder 2, %s12
      // Predicated region
      $region37: #{mixstyle_apply.2} parent=5 // pred_check
        %p254 = pneg %p253
      $region38: #{mixstyle_apply.2} parent=5 // pred_check_branch
        %256 = sbr.rel (%p254) target = $region40
      $region39: #{mixstyle_apply.2} parent=5 // pred_region
        %s257 = ssub.s32 %s12, 2
        // Predicated region
        $region41: #{mixstyle_apply.2} parent=39 // pred_check
          %p258 = pneg %p83
        $region42: #{mixstyle_apply.2} parent=39 // pred_check_branch
          %260 = sbr.rel (%p258) target = $region44
        $region43: #{mixstyle_apply.2} parent=39 // pred_region
          %p261 = scmp.lt.s32.totalorder %s23, 3
          %s262 = scalar_select %p261, %s23, 3
          %p263 = scmp.lt.s32.totalorder %s24, 0
          %s264 = scalar_select %p263, %s24, 0
          %s265 = sadd.s32 %s264, %s262
          %s266 = smul.addr %s265, 8
          %s267 = scalar_lea.vmem %s1, %s266
        $region44: #{mixstyle_apply.2} parent=39 // pred_fallthru
          _
        // Predicated region
        $region45: #{mixstyle_apply.2} parent=39 // pred_check
          %p268 = pneg %p111
        $region46: #{mixstyle_apply.2} parent=39 // pred_check_branch
          %270 = sbr.rel (%p268) target = $region48
        $region47: #{mixstyle_apply.2} parent=39 // pred_region
          %p271 = scmp.lt.s32.totalorder %s23, 3
          %s272 = scalar_select %p271, %s23, 3
          %p273 = scmp.lt.s32.totalorder %s24, 0
          %s274 = scalar_select %p273, %s24, 0
          %s275 = sadd.s32 %s274, %s272
          %s276 = smul.addr %s275, 8
          %s277 = scalar_lea.vmem %s2, %s276
        $region48: #{mixstyle_apply.2} parent=39 // pred_fallthru
          _
      $region40: #{mixstyle_apply.2} parent=5 // pred_fallthru
        _
    $region6: #{mixstyle_apply.2} parent=1 // loop_footer
      %s16 = sadd.s32 1, %s12
    $region7: #{mixstyle_apply.2} parent=1 // loop_footer_branch
      %11 = sbr.rel target = $region3
    $region8: #{mixstyle_apply.2} parent=1 // loop_exit
      _
    %278 = vsyncpa [#allocation3], 1
    %s279 = scalar_lea.sflag [#allocation3], 1
    %280 = vsyncpa %s279, 1

</llo_original>
